<compile_context>
chip_gen: v6e
topology: v6e:2x2x1
jax: 0.10.0
libtpu: 0.0.40
codegen_flags: <defaults>
</compile_context>

<pallas_src>
import functools

import jax
import jax.numpy as jnp
from jax import lax
from jax.experimental import pallas as pl
from jax.experimental.pallas import tpu as pltpu

TEMPERATURE = 2.0  # plain Python float -> never captured as a traced constant


def _threshold_kernel(tgt_ref, o1_ref, o2_ref, o3_ref, o4_ref, o5_ref, mimic_ref,
                      maxp_ref, thr_ref, *, n_rows, tn, inv_t):
    # tgt_ref   : [TN, 1]     int32  targets for this row tile
    # o*_ref    : [TN, C]     float  logits (outputs1..5, mimic) for this tile
    # maxp_ref  : [1, 8, 128] f32    per-tile partial max over outputs1..5
    # thr_ref   : [TN, 6]     f32    per-sample softmax over the 6 model margins
    pid = pl.program_id(0)
    c = o1_ref.shape[-1]
    in_dt = o1_ref.dtype
    neg = float(jnp.finfo(in_dt).min)                     # "exclude this lane" sentinel

    tgt = tgt_ref[...]                                    # [TN, 1] int32
    col = lax.broadcasted_iota(jnp.int32, (tn, c), 1)     # [TN, C]
    onehot = col == tgt                                   # hoisted, reused x6

    margins = []
    row_max = None                                        # [TN, 1] f32, outputs1..5 only
    for idx, ref in enumerate((o1_ref, o2_ref, o3_ref, o4_ref, o5_ref, mimic_ref)):
        x = ref[...]                                      # native dtype (bf16 stays bf16)
        m1 = jnp.max(x, axis=-1, keepdims=True)           # top-1, [TN, 1]
        is_max = x == m1
        # Fused integer lane reduction (requires C < 65536):
        #   low 16 bits -> number of lanes equal to the max
        #   high bits   -> nonzero iff the target lane is one of the maxima
        packed = is_max.astype(jnp.int32) + ((is_max & onehot).astype(jnp.int32) << 16)
        red = jnp.sum(packed, axis=-1, keepdims=True)     # [TN, 1] int32
        n_max = red & 0xFFFF
        hit = red >= (1 << 16)
        m2_excl = jnp.max(jnp.where(is_max, neg, x), axis=-1, keepdims=True)
        m1f = m1.astype(jnp.float32)
        m2f = jnp.where(n_max > 1, m1f, m2_excl.astype(jnp.float32))  # dup top-1 -> 0 margin
        margins.append(jnp.where(hit, m1f - m2f, 0.0))    # [TN, 1]
        if idx < 5:                                       # mimic excluded from max_preds
            row_max = m1f if row_max is None else jnp.maximum(row_max, m1f)

    # Scatter the 6 per-model margin columns into one [TN, 6] tile via broadcast
    # selects (no lane-axis concat / transposes).
    lane6 = lax.broadcasted_iota(jnp.int32, (1, 6), 1)    # [1, 6]
    z = jnp.zeros((tn, 6), jnp.float32)
    for idx, m in enumerate(margins):
        z = z + jnp.where(lane6 == idx, m, 0.0)
    z = z * inv_t
    z = z - jnp.max(z, axis=-1, keepdims=True)
    e = jnp.exp(z)
    thr_ref[...] = (e / jnp.sum(e, axis=-1, keepdims=True)).astype(thr_ref.dtype)

    # Per-tile partial max (global max == max of row maxima).  Mask padded rows
    # of a ragged last tile before reducing.
    row = pid * tn + lax.broadcasted_iota(jnp.int32, (tn, 1), 0)
    row_max = jnp.where(row < n_rows, row_max, float(jnp.finfo(jnp.float32).min))
    tile_max = jnp.max(row_max, axis=0, keepdims=True)    # [1, 1]
    maxp_ref[...] = jnp.broadcast_to(tile_max.reshape(1, 1, 1), maxp_ref.shape)


def threshold_weights5(outputs1, outputs2, outputs3, outputs4, outputs5,
                       mimic, targets, n_test, temperature=TEMPERATURE,
                       tile_n=None):
    n, c = outputs1.shape
    assert n == n_test
    assert c < 65536, "packed lane reduction assumes C < 65536"

    itemsize = jnp.dtype(outputs1.dtype).itemsize
    tgt = targets.astype(jnp.int32).reshape(n, 1)

    # ---- tile sizing: dtype-aware, ~16 MiB of logit traffic per grid step,
    #      subject to a generation-aware VMEM budget ----
    logit_row_bytes = 6 * c * itemsize                    # HBM traffic per row
    in_row_bytes = logit_row_bytes + 4                    # + int32 target
    interm_row_bytes = 3 * c * 4                          # in-kernel f32 temporaries

    try:
        vmem_cap = int(pltpu.get_tpu_info().vmem_capacity_bytes)
    except Exception:
        vmem_cap = 64 * 1024 * 1024                       # conservative (v7x per-TC)

    pipeline_budget = min(vmem_cap // 2, 40 * 1024 * 1024)
    tn_vmem = pipeline_budget // (2 * in_row_bytes + interm_row_bytes)
    tn_step = (16 * 1024 * 1024) // max(1, logit_row_bytes)
    tn = max(8, (min(tn_vmem, tn_step) // 8) * 8)
    if tile_n is not None:
        tn = int(tile_n)
    if n <= tn:
        tn = n
    num_tiles = pl.cdiv(n, tn)

    vmem_limit = 2 * in_row_bytes * tn + interm_row_bytes * tn + (6 << 20)
    vmem_limit = int(max(16 * 1024 * 1024,
                         min(vmem_limit,
                             vmem_cap - (8 * 1024 * 1024),
                             100 * 1024 * 1024)))

    kernel = functools.partial(_threshold_kernel, n_rows=n, tn=tn,
                               inv_t=1.0 / float(temperature))

    logits_spec = pl.BlockSpec((tn, c), lambda i: (i, 0))

    cost = pl.CostEstimate(
        flops=int(12 * 6 * n * c),
        transcendentals=int(6 * n),
        bytes_accessed=int(6 * n * c * itemsize + n * 4 + n * 6 * 4
                           + num_tiles * 8 * 128 * 4),
    )

    maxp, thr = pl.pallas_call(
        kernel,
        grid=(num_tiles,),
        out_shape=(
            jax.ShapeDtypeStruct((num_tiles, 8, 128), jnp.float32),
            jax.ShapeDtypeStruct((n, 6), jnp.float32),
        ),
        in_specs=[
            pl.BlockSpec((tn, 1), lambda i: (i, 0)),      # targets
            logits_spec, logits_spec, logits_spec,        # outputs1..3
            logits_spec, logits_spec,                     # outputs4..5
            logits_spec,                                  # mimic
        ],
        out_specs=(
            pl.BlockSpec((1, 8, 128), lambda i: (i, 0, 0)),   # per-tile partial max
            pl.BlockSpec((tn, 6), lambda i: (i, 0)),
        ),
        compiler_params=pltpu.CompilerParams(
            dimension_semantics=("parallel",),            # megacore-shardable (v7x)
            vmem_limit_bytes=vmem_limit,
        ),
        cost_estimate=cost,
    )(tgt, outputs1, outputs2, outputs3, outputs4, outputs5, mimic)

    max_preds = jnp.max(maxp)                             # reduce per-tile partials
    return max_preds, thr


def _reference(outputs_list, mimic, targets, T=TEMPERATURE):
    # pure-numpy reference mirroring the PyTorch per-sample loop
    import numpy as np
    outs = [np.asarray(o, dtype=np.float32) for o in outputs_list] + \
           [np.asarray(mimic, dtype=np.float32)]
    tgt = np.asarray(targets)
    n = outs[0].shape[0]
    rows = []
    for i in range(n):
        margins = []
        for o in outs:
            srt = np.sort(o[i])[::-1]
            if o[i][tgt[i]] == srt[0]:
                margins.append(srt[0] - srt[1])
            else:
                margins.append(0.0)
        m = np.array(margins, dtype=np.float32) / T
        m = m - m.max()
        e = np.exp(m)
        rows.append(e / e.sum())
    out_thr = np.stack(rows, axis=0)
    max_preds = max(float(o.max()) for o in outs[:5])
    return max_preds, out_thr


def _run_case(key, n, c, tile_n=None):
    import numpy as np
    keys = jax.random.split(key, 7)
    tens = [jax.random.normal(keys[i], (n, c), dtype=jnp.float32) for i in range(6)]
    o1, o2, o3, o4, o5, mimic = tens
    targets = jax.random.randint(keys[6], (n,), 0, c, dtype=jnp.int32)

    max_preds, out_thr = threshold_weights5(o1, o2, o3, o4, o5, mimic,
                                            targets, n, tile_n=tile_n)
    max_preds = jax.block_until_ready(max_preds)
    out_thr = jax.block_until_ready(out_thr)

    ref_max, ref_thr = _reference([o1, o2, o3, o4, o5], mimic, targets)
    np.testing.assert_allclose(float(max_preds), ref_max, rtol=1e-5, atol=1e-5)
    np.testing.assert_allclose(np.asarray(out_thr), ref_thr, rtol=1e-5, atol=1e-5)


if __name__ == "__main__":
    key = jax.random.PRNGKey(0)
    k1, k2, k3 = jax.random.split(key, 3)
    # small single-tile case
    _run_case(k1, n=8, c=16)
    # multi-tile case exercising the parallel grid + per-tile max partials
    _run_case(k2, n=24, c=16, tile_n=8)
    # ragged last tile (exercises row masking of the padded tail)
    _run_case(k3, n=20, c=16, tile_n=8)
    print("KERNEL_OK")
</pallas_src>

<mosaic_0001>
module attributes {stable_mosaic.version = 11 : i64} {
  func.func @_threshold_kernel(%arg0: i32, %arg1: memref<8x1xi32, #tpu.memory_space<vmem>>, %arg2: memref<8x16xf32, #tpu.memory_space<vmem>>, %arg3: memref<8x16xf32, #tpu.memory_space<vmem>>, %arg4: memref<8x16xf32, #tpu.memory_space<vmem>>, %arg5: memref<8x16xf32, #tpu.memory_space<vmem>>, %arg6: memref<8x16xf32, #tpu.memory_space<vmem>>, %arg7: memref<8x16xf32, #tpu.memory_space<vmem>>, %arg8: memref<1x8x128xf32, #tpu.memory_space<vmem>>, %arg9: memref<8x6xf32, #tpu.memory_space<vmem>>) attributes {dimension_semantics = [#tpu.dimension_semantics<parallel>], iteration_bounds = array<i64: 1>, scalar_prefetch = 0 : i64, scratch_operands = 0 : i64, tpu.core_type = #tpu.core_type<tc>, window_params = [{transform_indices = @transform_0, window_bounds = array<i64: 8, 1>}, {transform_indices = @transform_1, window_bounds = array<i64: 8, 16>}, {transform_indices = @transform_2, window_bounds = array<i64: 8, 16>}, {transform_indices = @transform_3, window_bounds = array<i64: 8, 16>}, {transform_indices = @transform_4, window_bounds = array<i64: 8, 16>}, {transform_indices = @transform_5, window_bounds = array<i64: 8, 16>}, {transform_indices = @transform_6, window_bounds = array<i64: 8, 16>}, {transform_indices = @transform_7, window_bounds = array<i64: 1, 8, 128>}, {transform_indices = @transform_8, window_bounds = array<i64: 8, 6>}]} {
    %c0 = arith.constant 0 : index
    %c0_0 = arith.constant 0 : index
    %0 = vector.load %arg1[%c0, %c0_0] : memref<8x1xi32, #tpu.memory_space<vmem>>, vector<8x1xi32>
    %1 = tpu.iota {dimensions = array<i32: 1>} : vector<8x16xi32>
    %2 = vector.broadcast %0 : vector<8x1xi32> to vector<8x16xi32>
    %3 = arith.cmpi eq, %1, %2 : vector<8x16xi32>
    %c0_1 = arith.constant 0 : index
    %c0_2 = arith.constant 0 : index
    %4 = vector.load %arg2[%c0_1, %c0_2] : memref<8x16xf32, #tpu.memory_space<vmem>>, vector<8x16xf32>
    %cst = arith.constant dense<0xFF800000> : vector<8xf32>
    %5 = vector.multi_reduction <maximumf>, %4, %cst [1] : vector<8x16xf32> to vector<8xf32>
    %6 = vector.shape_cast %5 : vector<8xf32> to vector<8x1xf32>
    %7 = vector.broadcast %6 : vector<8x1xf32> to vector<8x16xf32>
    %8 = arith.cmpf oeq, %4, %7 : vector<8x16xf32>
    %9 = arith.extui %8 : vector<8x16xi1> to vector<8x16xi32>
    %10 = arith.andi %8, %3 : vector<8x16xi1>
    %11 = arith.extui %10 : vector<8x16xi1> to vector<8x16xi32>
    %c16_i32 = arith.constant 16 : i32
    %12 = vector.broadcast %c16_i32 : i32 to vector<8x16xi32>
    %13 = arith.shli %11, %12 : vector<8x16xi32>
    %14 = arith.addi %9, %13 : vector<8x16xi32>
    %cst_3 = arith.constant dense<0> : vector<8xi32>
    %15 = vector.multi_reduction <add>, %14, %cst_3 [1] : vector<8x16xi32> to vector<8xi32>
    %16 = vector.shape_cast %15 : vector<8xi32> to vector<8x1xi32>
    %c65535_i32 = arith.constant 65535 : i32
    %17 = vector.broadcast %c65535_i32 : i32 to vector<8x1xi32>
    %18 = arith.andi %16, %17 : vector<8x1xi32>
    %c65536_i32 = arith.constant 65536 : i32
    %19 = vector.broadcast %c65536_i32 : i32 to vector<8x1xi32>
    %20 = arith.cmpi sge, %16, %19 : vector<8x1xi32>
    %cst_4 = arith.constant -3.40282347E+38 : f32
    %21 = vector.broadcast %cst_4 : f32 to vector<8x16xf32>
    %22 = arith.select %8, %21, %4 : vector<8x16xi1>, vector<8x16xf32>
    %cst_5 = arith.constant dense<0xFF800000> : vector<8xf32>
    %23 = vector.multi_reduction <maximumf>, %22, %cst_5 [1] : vector<8x16xf32> to vector<8xf32>
    %24 = vector.shape_cast %23 : vector<8xf32> to vector<8x1xf32>
    %c1_i32 = arith.constant 1 : i32
    %25 = vector.broadcast %c1_i32 : i32 to vector<8x1xi32>
    %26 = arith.cmpi sgt, %18, %25 : vector<8x1xi32>
    %27 = arith.select %26, %6, %24 : vector<8x1xi1>, vector<8x1xf32>
    %28 = arith.subf %6, %27 : vector<8x1xf32>
    %cst_6 = arith.constant 0.000000e+00 : f32
    %29 = vector.broadcast %cst_6 : f32 to vector<8x1xf32>
    %30 = arith.select %20, %28, %29 : vector<8x1xi1>, vector<8x1xf32>
    %c0_7 = arith.constant 0 : index
    %c0_8 = arith.constant 0 : index
    %31 = vector.load %arg3[%c0_7, %c0_8] : memref<8x16xf32, #tpu.memory_space<vmem>>, vector<8x16xf32>
    %cst_9 = arith.constant dense<0xFF800000> : vector<8xf32>
    %32 = vector.multi_reduction <maximumf>, %31, %cst_9 [1] : vector<8x16xf32> to vector<8xf32>
    %33 = vector.shape_cast %32 : vector<8xf32> to vector<8x1xf32>
    %34 = vector.broadcast %33 : vector<8x1xf32> to vector<8x16xf32>
    %35 = arith.cmpf oeq, %31, %34 : vector<8x16xf32>
    %36 = arith.extui %35 : vector<8x16xi1> to vector<8x16xi32>
    %37 = arith.andi %35, %3 : vector<8x16xi1>
    %38 = arith.extui %37 : vector<8x16xi1> to vector<8x16xi32>
    %c16_i32_10 = arith.constant 16 : i32
    %39 = vector.broadcast %c16_i32_10 : i32 to vector<8x16xi32>
    %40 = arith.shli %38, %39 : vector<8x16xi32>
    %41 = arith.addi %36, %40 : vector<8x16xi32>
    %cst_11 = arith.constant dense<0> : vector<8xi32>
    %42 = vector.multi_reduction <add>, %41, %cst_11 [1] : vector<8x16xi32> to vector<8xi32>
    %43 = vector.shape_cast %42 : vector<8xi32> to vector<8x1xi32>
    %c65535_i32_12 = arith.constant 65535 : i32
    %44 = vector.broadcast %c65535_i32_12 : i32 to vector<8x1xi32>
    %45 = arith.andi %43, %44 : vector<8x1xi32>
    %c65536_i32_13 = arith.constant 65536 : i32
    %46 = vector.broadcast %c65536_i32_13 : i32 to vector<8x1xi32>
    %47 = arith.cmpi sge, %43, %46 : vector<8x1xi32>
    %cst_14 = arith.constant -3.40282347E+38 : f32
    %48 = vector.broadcast %cst_14 : f32 to vector<8x16xf32>
    %49 = arith.select %35, %48, %31 : vector<8x16xi1>, vector<8x16xf32>
    %cst_15 = arith.constant dense<0xFF800000> : vector<8xf32>
    %50 = vector.multi_reduction <maximumf>, %49, %cst_15 [1] : vector<8x16xf32> to vector<8xf32>
    %51 = vector.shape_cast %50 : vector<8xf32> to vector<8x1xf32>
    %c1_i32_16 = arith.constant 1 : i32
    %52 = vector.broadcast %c1_i32_16 : i32 to vector<8x1xi32>
    %53 = arith.cmpi sgt, %45, %52 : vector<8x1xi32>
    %54 = arith.select %53, %33, %51 : vector<8x1xi1>, vector<8x1xf32>
    %55 = arith.subf %33, %54 : vector<8x1xf32>
    %cst_17 = arith.constant 0.000000e+00 : f32
    %56 = vector.broadcast %cst_17 : f32 to vector<8x1xf32>
    %57 = arith.select %47, %55, %56 : vector<8x1xi1>, vector<8x1xf32>
    %58 = arith.maximumf %6, %33 : vector<8x1xf32>
    %c0_18 = arith.constant 0 : index
    %c0_19 = arith.constant 0 : index
    %59 = vector.load %arg4[%c0_18, %c0_19] : memref<8x16xf32, #tpu.memory_space<vmem>>, vector<8x16xf32>
    %cst_20 = arith.constant dense<0xFF800000> : vector<8xf32>
    %60 = vector.multi_reduction <maximumf>, %59, %cst_20 [1] : vector<8x16xf32> to vector<8xf32>
    %61 = vector.shape_cast %60 : vector<8xf32> to vector<8x1xf32>
    %62 = vector.broadcast %61 : vector<8x1xf32> to vector<8x16xf32>
    %63 = arith.cmpf oeq, %59, %62 : vector<8x16xf32>
    %64 = arith.extui %63 : vector<8x16xi1> to vector<8x16xi32>
    %65 = arith.andi %63, %3 : vector<8x16xi1>
    %66 = arith.extui %65 : vector<8x16xi1> to vector<8x16xi32>
    %c16_i32_21 = arith.constant 16 : i32
    %67 = vector.broadcast %c16_i32_21 : i32 to vector<8x16xi32>
    %68 = arith.shli %66, %67 : vector<8x16xi32>
    %69 = arith.addi %64, %68 : vector<8x16xi32>
    %cst_22 = arith.constant dense<0> : vector<8xi32>
    %70 = vector.multi_reduction <add>, %69, %cst_22 [1] : vector<8x16xi32> to vector<8xi32>
    %71 = vector.shape_cast %70 : vector<8xi32> to vector<8x1xi32>
    %c65535_i32_23 = arith.constant 65535 : i32
    %72 = vector.broadcast %c65535_i32_23 : i32 to vector<8x1xi32>
    %73 = arith.andi %71, %72 : vector<8x1xi32>
    %c65536_i32_24 = arith.constant 65536 : i32
    %74 = vector.broadcast %c65536_i32_24 : i32 to vector<8x1xi32>
    %75 = arith.cmpi sge, %71, %74 : vector<8x1xi32>
    %cst_25 = arith.constant -3.40282347E+38 : f32
    %76 = vector.broadcast %cst_25 : f32 to vector<8x16xf32>
    %77 = arith.select %63, %76, %59 : vector<8x16xi1>, vector<8x16xf32>
    %cst_26 = arith.constant dense<0xFF800000> : vector<8xf32>
    %78 = vector.multi_reduction <maximumf>, %77, %cst_26 [1] : vector<8x16xf32> to vector<8xf32>
    %79 = vector.shape_cast %78 : vector<8xf32> to vector<8x1xf32>
    %c1_i32_27 = arith.constant 1 : i32
    %80 = vector.broadcast %c1_i32_27 : i32 to vector<8x1xi32>
    %81 = arith.cmpi sgt, %73, %80 : vector<8x1xi32>
    %82 = arith.select %81, %61, %79 : vector<8x1xi1>, vector<8x1xf32>
    %83 = arith.subf %61, %82 : vector<8x1xf32>
    %cst_28 = arith.constant 0.000000e+00 : f32
    %84 = vector.broadcast %cst_28 : f32 to vector<8x1xf32>
    %85 = arith.select %75, %83, %84 : vector<8x1xi1>, vector<8x1xf32>
    %86 = arith.maximumf %58, %61 : vector<8x1xf32>
    %c0_29 = arith.constant 0 : index
    %c0_30 = arith.constant 0 : index
    %87 = vector.load %arg5[%c0_29, %c0_30] : memref<8x16xf32, #tpu.memory_space<vmem>>, vector<8x16xf32>
    %cst_31 = arith.constant dense<0xFF800000> : vector<8xf32>
    %88 = vector.multi_reduction <maximumf>, %87, %cst_31 [1] : vector<8x16xf32> to vector<8xf32>
    %89 = vector.shape_cast %88 : vector<8xf32> to vector<8x1xf32>
    %90 = vector.broadcast %89 : vector<8x1xf32> to vector<8x16xf32>
    %91 = arith.cmpf oeq, %87, %90 : vector<8x16xf32>
    %92 = arith.extui %91 : vector<8x16xi1> to vector<8x16xi32>
    %93 = arith.andi %91, %3 : vector<8x16xi1>
    %94 = arith.extui %93 : vector<8x16xi1> to vector<8x16xi32>
    %c16_i32_32 = arith.constant 16 : i32
    %95 = vector.broadcast %c16_i32_32 : i32 to vector<8x16xi32>
    %96 = arith.shli %94, %95 : vector<8x16xi32>
    %97 = arith.addi %92, %96 : vector<8x16xi32>
    %cst_33 = arith.constant dense<0> : vector<8xi32>
    %98 = vector.multi_reduction <add>, %97, %cst_33 [1] : vector<8x16xi32> to vector<8xi32>
    %99 = vector.shape_cast %98 : vector<8xi32> to vector<8x1xi32>
    %c65535_i32_34 = arith.constant 65535 : i32
    %100 = vector.broadcast %c65535_i32_34 : i32 to vector<8x1xi32>
    %101 = arith.andi %99, %100 : vector<8x1xi32>
    %c65536_i32_35 = arith.constant 65536 : i32
    %102 = vector.broadcast %c65536_i32_35 : i32 to vector<8x1xi32>
    %103 = arith.cmpi sge, %99, %102 : vector<8x1xi32>
    %cst_36 = arith.constant -3.40282347E+38 : f32
    %104 = vector.broadcast %cst_36 : f32 to vector<8x16xf32>
    %105 = arith.select %91, %104, %87 : vector<8x16xi1>, vector<8x16xf32>
    %cst_37 = arith.constant dense<0xFF800000> : vector<8xf32>
    %106 = vector.multi_reduction <maximumf>, %105, %cst_37 [1] : vector<8x16xf32> to vector<8xf32>
    %107 = vector.shape_cast %106 : vector<8xf32> to vector<8x1xf32>
    %c1_i32_38 = arith.constant 1 : i32
    %108 = vector.broadcast %c1_i32_38 : i32 to vector<8x1xi32>
    %109 = arith.cmpi sgt, %101, %108 : vector<8x1xi32>
    %110 = arith.select %109, %89, %107 : vector<8x1xi1>, vector<8x1xf32>
    %111 = arith.subf %89, %110 : vector<8x1xf32>
    %cst_39 = arith.constant 0.000000e+00 : f32
    %112 = vector.broadcast %cst_39 : f32 to vector<8x1xf32>
    %113 = arith.select %103, %111, %112 : vector<8x1xi1>, vector<8x1xf32>
    %114 = arith.maximumf %86, %89 : vector<8x1xf32>
    %c0_40 = arith.constant 0 : index
    %c0_41 = arith.constant 0 : index
    %115 = vector.load %arg6[%c0_40, %c0_41] : memref<8x16xf32, #tpu.memory_space<vmem>>, vector<8x16xf32>
    %cst_42 = arith.constant dense<0xFF800000> : vector<8xf32>
    %116 = vector.multi_reduction <maximumf>, %115, %cst_42 [1] : vector<8x16xf32> to vector<8xf32>
    %117 = vector.shape_cast %116 : vector<8xf32> to vector<8x1xf32>
    %118 = vector.broadcast %117 : vector<8x1xf32> to vector<8x16xf32>
    %119 = arith.cmpf oeq, %115, %118 : vector<8x16xf32>
    %120 = arith.extui %119 : vector<8x16xi1> to vector<8x16xi32>
    %121 = arith.andi %119, %3 : vector<8x16xi1>
    %122 = arith.extui %121 : vector<8x16xi1> to vector<8x16xi32>
    %c16_i32_43 = arith.constant 16 : i32
    %123 = vector.broadcast %c16_i32_43 : i32 to vector<8x16xi32>
    %124 = arith.shli %122, %123 : vector<8x16xi32>
    %125 = arith.addi %120, %124 : vector<8x16xi32>
    %cst_44 = arith.constant dense<0> : vector<8xi32>
    %126 = vector.multi_reduction <add>, %125, %cst_44 [1] : vector<8x16xi32> to vector<8xi32>
    %127 = vector.shape_cast %126 : vector<8xi32> to vector<8x1xi32>
    %c65535_i32_45 = arith.constant 65535 : i32
    %128 = vector.broadcast %c65535_i32_45 : i32 to vector<8x1xi32>
    %129 = arith.andi %127, %128 : vector<8x1xi32>
    %c65536_i32_46 = arith.constant 65536 : i32
    %130 = vector.broadcast %c65536_i32_46 : i32 to vector<8x1xi32>
    %131 = arith.cmpi sge, %127, %130 : vector<8x1xi32>
    %cst_47 = arith.constant -3.40282347E+38 : f32
    %132 = vector.broadcast %cst_47 : f32 to vector<8x16xf32>
    %133 = arith.select %119, %132, %115 : vector<8x16xi1>, vector<8x16xf32>
    %cst_48 = arith.constant dense<0xFF800000> : vector<8xf32>
    %134 = vector.multi_reduction <maximumf>, %133, %cst_48 [1] : vector<8x16xf32> to vector<8xf32>
    %135 = vector.shape_cast %134 : vector<8xf32> to vector<8x1xf32>
    %c1_i32_49 = arith.constant 1 : i32
    %136 = vector.broadcast %c1_i32_49 : i32 to vector<8x1xi32>
    %137 = arith.cmpi sgt, %129, %136 : vector<8x1xi32>
    %138 = arith.select %137, %117, %135 : vector<8x1xi1>, vector<8x1xf32>
    %139 = arith.subf %117, %138 : vector<8x1xf32>
    %cst_50 = arith.constant 0.000000e+00 : f32
    %140 = vector.broadcast %cst_50 : f32 to vector<8x1xf32>
    %141 = arith.select %131, %139, %140 : vector<8x1xi1>, vector<8x1xf32>
    %142 = arith.maximumf %114, %117 : vector<8x1xf32>
    %c0_51 = arith.constant 0 : index
    %c0_52 = arith.constant 0 : index
    %143 = vector.load %arg7[%c0_51, %c0_52] : memref<8x16xf32, #tpu.memory_space<vmem>>, vector<8x16xf32>
    %cst_53 = arith.constant dense<0xFF800000> : vector<8xf32>
    %144 = vector.multi_reduction <maximumf>, %143, %cst_53 [1] : vector<8x16xf32> to vector<8xf32>
    %145 = vector.shape_cast %144 : vector<8xf32> to vector<8x1xf32>
    %146 = vector.broadcast %145 : vector<8x1xf32> to vector<8x16xf32>
    %147 = arith.cmpf oeq, %143, %146 : vector<8x16xf32>
    %148 = arith.extui %147 : vector<8x16xi1> to vector<8x16xi32>
    %149 = arith.andi %147, %3 : vector<8x16xi1>
    %150 = arith.extui %149 : vector<8x16xi1> to vector<8x16xi32>
    %c16_i32_54 = arith.constant 16 : i32
    %151 = vector.broadcast %c16_i32_54 : i32 to vector<8x16xi32>
    %152 = arith.shli %150, %151 : vector<8x16xi32>
    %153 = arith.addi %148, %152 : vector<8x16xi32>
    %cst_55 = arith.constant dense<0> : vector<8xi32>
    %154 = vector.multi_reduction <add>, %153, %cst_55 [1] : vector<8x16xi32> to vector<8xi32>
    %155 = vector.shape_cast %154 : vector<8xi32> to vector<8x1xi32>
    %c65535_i32_56 = arith.constant 65535 : i32
    %156 = vector.broadcast %c65535_i32_56 : i32 to vector<8x1xi32>
    %157 = arith.andi %155, %156 : vector<8x1xi32>
    %c65536_i32_57 = arith.constant 65536 : i32
    %158 = vector.broadcast %c65536_i32_57 : i32 to vector<8x1xi32>
    %159 = arith.cmpi sge, %155, %158 : vector<8x1xi32>
    %cst_58 = arith.constant -3.40282347E+38 : f32
    %160 = vector.broadcast %cst_58 : f32 to vector<8x16xf32>
    %161 = arith.select %147, %160, %143 : vector<8x16xi1>, vector<8x16xf32>
    %cst_59 = arith.constant dense<0xFF800000> : vector<8xf32>
    %162 = vector.multi_reduction <maximumf>, %161, %cst_59 [1] : vector<8x16xf32> to vector<8xf32>
    %163 = vector.shape_cast %162 : vector<8xf32> to vector<8x1xf32>
    %c1_i32_60 = arith.constant 1 : i32
    %164 = vector.broadcast %c1_i32_60 : i32 to vector<8x1xi32>
    %165 = arith.cmpi sgt, %157, %164 : vector<8x1xi32>
    %166 = arith.select %165, %145, %163 : vector<8x1xi1>, vector<8x1xf32>
    %167 = arith.subf %145, %166 : vector<8x1xf32>
    %cst_61 = arith.constant 0.000000e+00 : f32
    %168 = vector.broadcast %cst_61 : f32 to vector<8x1xf32>
    %169 = arith.select %159, %167, %168 : vector<8x1xi1>, vector<8x1xf32>
    %170 = tpu.iota {dimensions = array<i32: 1>} : vector<1x6xi32>
    %cst_62 = arith.constant 0.000000e+00 : f32
    %171 = vector.broadcast %cst_62 : f32 to vector<8x6xf32>
    %c0_i32 = arith.constant 0 : i32
    %172 = vector.broadcast %c0_i32 : i32 to vector<1x6xi32>
    %173 = arith.cmpi eq, %170, %172 : vector<1x6xi32>
    %cst_63 = arith.constant 0.000000e+00 : f32
    %174 = vector.shape_cast %173 : vector<1x6xi1> to vector<1x6xi1>
    %175 = vector.broadcast %174 : vector<1x6xi1> to vector<8x6xi1>
    %176 = vector.shape_cast %30 : vector<8x1xf32> to vector<8x1xf32>
    %177 = vector.broadcast %176 : vector<8x1xf32> to vector<8x6xf32>
    %178 = vector.broadcast %cst_63 : f32 to vector<8x6xf32>
    %179 = arith.select %175, %177, %178 : vector<8x6xi1>, vector<8x6xf32>
    %180 = arith.addf %171, %179 : vector<8x6xf32>
    %c1_i32_64 = arith.constant 1 : i32
    %181 = vector.broadcast %c1_i32_64 : i32 to vector<1x6xi32>
    %182 = arith.cmpi eq, %170, %181 : vector<1x6xi32>
    %cst_65 = arith.constant 0.000000e+00 : f32
    %183 = vector.shape_cast %182 : vector<1x6xi1> to vector<1x6xi1>
    %184 = vector.broadcast %183 : vector<1x6xi1> to vector<8x6xi1>
    %185 = vector.shape_cast %57 : vector<8x1xf32> to vector<8x1xf32>
    %186 = vector.broadcast %185 : vector<8x1xf32> to vector<8x6xf32>
    %187 = vector.broadcast %cst_65 : f32 to vector<8x6xf32>
    %188 = arith.select %184, %186, %187 : vector<8x6xi1>, vector<8x6xf32>
    %189 = arith.addf %180, %188 : vector<8x6xf32>
    %c2_i32 = arith.constant 2 : i32
    %190 = vector.broadcast %c2_i32 : i32 to vector<1x6xi32>
    %191 = arith.cmpi eq, %170, %190 : vector<1x6xi32>
    %cst_66 = arith.constant 0.000000e+00 : f32
    %192 = vector.shape_cast %191 : vector<1x6xi1> to vector<1x6xi1>
    %193 = vector.broadcast %192 : vector<1x6xi1> to vector<8x6xi1>
    %194 = vector.shape_cast %85 : vector<8x1xf32> to vector<8x1xf32>
    %195 = vector.broadcast %194 : vector<8x1xf32> to vector<8x6xf32>
    %196 = vector.broadcast %cst_66 : f32 to vector<8x6xf32>
    %197 = arith.select %193, %195, %196 : vector<8x6xi1>, vector<8x6xf32>
    %198 = arith.addf %189, %197 : vector<8x6xf32>
    %c3_i32 = arith.constant 3 : i32
    %199 = vector.broadcast %c3_i32 : i32 to vector<1x6xi32>
    %200 = arith.cmpi eq, %170, %199 : vector<1x6xi32>
    %cst_67 = arith.constant 0.000000e+00 : f32
    %201 = vector.shape_cast %200 : vector<1x6xi1> to vector<1x6xi1>
    %202 = vector.broadcast %201 : vector<1x6xi1> to vector<8x6xi1>
    %203 = vector.shape_cast %113 : vector<8x1xf32> to vector<8x1xf32>
    %204 = vector.broadcast %203 : vector<8x1xf32> to vector<8x6xf32>
    %205 = vector.broadcast %cst_67 : f32 to vector<8x6xf32>
    %206 = arith.select %202, %204, %205 : vector<8x6xi1>, vector<8x6xf32>
    %207 = arith.addf %198, %206 : vector<8x6xf32>
    %c4_i32 = arith.constant 4 : i32
    %208 = vector.broadcast %c4_i32 : i32 to vector<1x6xi32>
    %209 = arith.cmpi eq, %170, %208 : vector<1x6xi32>
    %cst_68 = arith.constant 0.000000e+00 : f32
    %210 = vector.shape_cast %209 : vector<1x6xi1> to vector<1x6xi1>
    %211 = vector.broadcast %210 : vector<1x6xi1> to vector<8x6xi1>
    %212 = vector.shape_cast %141 : vector<8x1xf32> to vector<8x1xf32>
    %213 = vector.broadcast %212 : vector<8x1xf32> to vector<8x6xf32>
    %214 = vector.broadcast %cst_68 : f32 to vector<8x6xf32>
    %215 = arith.select %211, %213, %214 : vector<8x6xi1>, vector<8x6xf32>
    %216 = arith.addf %207, %215 : vector<8x6xf32>
    %c5_i32 = arith.constant 5 : i32
    %217 = vector.broadcast %c5_i32 : i32 to vector<1x6xi32>
    %218 = arith.cmpi eq, %170, %217 : vector<1x6xi32>
    %cst_69 = arith.constant 0.000000e+00 : f32
    %219 = vector.shape_cast %218 : vector<1x6xi1> to vector<1x6xi1>
    %220 = vector.broadcast %219 : vector<1x6xi1> to vector<8x6xi1>
    %221 = vector.shape_cast %169 : vector<8x1xf32> to vector<8x1xf32>
    %222 = vector.broadcast %221 : vector<8x1xf32> to vector<8x6xf32>
    %223 = vector.broadcast %cst_69 : f32 to vector<8x6xf32>
    %224 = arith.select %220, %222, %223 : vector<8x6xi1>, vector<8x6xf32>
    %225 = arith.addf %216, %224 : vector<8x6xf32>
    %cst_70 = arith.constant 5.000000e-01 : f32
    %226 = vector.broadcast %cst_70 : f32 to vector<8x6xf32>
    %227 = arith.mulf %225, %226 : vector<8x6xf32>
    %cst_71 = arith.constant dense<0xFF800000> : vector<8xf32>
    %228 = vector.multi_reduction <maximumf>, %227, %cst_71 [1] : vector<8x6xf32> to vector<8xf32>
    %229 = vector.shape_cast %228 : vector<8xf32> to vector<8x1xf32>
    %230 = vector.broadcast %229 : vector<8x1xf32> to vector<8x6xf32>
    %231 = arith.subf %227, %230 : vector<8x6xf32>
    %232 = math.exp %231 : vector<8x6xf32>
    %cst_72 = arith.constant dense<0.000000e+00> : vector<8xf32>
    %233 = vector.multi_reduction <add>, %232, %cst_72 [1] : vector<8x6xf32> to vector<8xf32>
    %234 = vector.shape_cast %233 : vector<8xf32> to vector<8x1xf32>
    %235 = vector.broadcast %234 : vector<8x1xf32> to vector<8x6xf32>
    %236 = arith.divf %232, %235 : vector<8x6xf32>
    %c0_73 = arith.constant 0 : index
    %c0_74 = arith.constant 0 : index
    %237 = vector.load %arg9[%c0_73, %c0_74] : memref<8x6xf32, #tpu.memory_space<vmem>>, vector<8x6xf32>
    tpu.vector_store %arg9[%c0_73, %c0_74], %236 {strides = array<i32>} : memref<8x6xf32, #tpu.memory_space<vmem>>, vector<8x6xf32>,
    %c8_i32 = arith.constant 8 : i32
    %238 = arith.muli %arg0, %c8_i32 : i32
    %239 = tpu.iota {dimensions = array<i32: 0>} : vector<8x1xi32>
    %240 = vector.broadcast %238 : i32 to vector<8x1xi32>
    %241 = arith.addi %240, %239 : vector<8x1xi32>
    %c8_i32_75 = arith.constant 8 : i32
    %242 = vector.broadcast %c8_i32_75 : i32 to vector<8x1xi32>
    %243 = arith.cmpi slt, %241, %242 : vector<8x1xi32>
    %cst_76 = arith.constant -3.40282347E+38 : f32
    %244 = vector.broadcast %cst_76 : f32 to vector<8x1xf32>
    %245 = arith.select %243, %142, %244 : vector<8x1xi1>, vector<8x1xf32>
    %cst_77 = arith.constant dense<0xFF800000> : vector<1xf32>
    %246 = vector.multi_reduction <maximumf>, %245, %cst_77 [0] : vector<8x1xf32> to vector<1xf32>
    %247 = vector.shape_cast %246 : vector<1xf32> to vector<1x1xf32>
    %248 = vector.shape_cast %247 : vector<1x1xf32> to vector<1x1x1xf32>
    %249 = vector.shape_cast %248 : vector<1x1x1xf32> to vector<1x1x1xf32>
    %250 = vector.broadcast %249 : vector<1x1x1xf32> to vector<1x8x128xf32>
    %c0_78 = arith.constant 0 : index
    %c0_79 = arith.constant 0 : index
    %c0_80 = arith.constant 0 : index
    %251 = vector.load %arg8[%c0_78, %c0_79, %c0_80] : memref<1x8x128xf32, #tpu.memory_space<vmem>>, vector<1x8x128xf32>
    tpu.vector_store %arg8[%c0_78, %c0_79, %c0_80], %250 {strides = array<i32>} : memref<1x8x128xf32, #tpu.memory_space<vmem>>, vector<1x8x128xf32>,
    return
  }
  func.func @transform_0(%arg0: i32) -> (i32, i32) {
    %c0_i32 = arith.constant 0 : i32
    %c0_i32_0 = arith.constant 0 : i32
    return %arg0, %c0_i32 : i32, i32
  }
  func.func @transform_1(%arg0: i32) -> (i32, i32) {
    %c0_i32 = arith.constant 0 : i32
    %c0_i32_0 = arith.constant 0 : i32
    return %arg0, %c0_i32 : i32, i32
  }
  func.func @transform_2(%arg0: i32) -> (i32, i32) {
    %c0_i32 = arith.constant 0 : i32
    %c0_i32_0 = arith.constant 0 : i32
    return %arg0, %c0_i32 : i32, i32
  }
  func.func @transform_3(%arg0: i32) -> (i32, i32) {
    %c0_i32 = arith.constant 0 : i32
    %c0_i32_0 = arith.constant 0 : i32
    return %arg0, %c0_i32 : i32, i32
  }
  func.func @transform_4(%arg0: i32) -> (i32, i32) {
    %c0_i32 = arith.constant 0 : i32
    %c0_i32_0 = arith.constant 0 : i32
    return %arg0, %c0_i32 : i32, i32
  }
  func.func @transform_5(%arg0: i32) -> (i32, i32) {
    %c0_i32 = arith.constant 0 : i32
    %c0_i32_0 = arith.constant 0 : i32
    return %arg0, %c0_i32 : i32, i32
  }
  func.func @transform_6(%arg0: i32) -> (i32, i32) {
    %c0_i32 = arith.constant 0 : i32
    %c0_i32_0 = arith.constant 0 : i32
    return %arg0, %c0_i32 : i32, i32
  }
  func.func @transform_7(%arg0: i32) -> (i32, i32, i32) {
    %c0_i32 = arith.constant 0 : i32
    %c0_i32_0 = arith.constant 0 : i32
    %c0_i32_1 = arith.constant 0 : i32
    return %arg0, %c0_i32, %c0_i32_0 : i32, i32, i32
  }
  func.func @transform_8(%arg0: i32) -> (i32, i32) {
    %c0_i32 = arith.constant 0 : i32
    %c0_i32_0 = arith.constant 0 : i32
    return %arg0, %c0_i32 : i32, i32
  }
}

</mosaic_0001>

<llo_original>
// kernel: tpu_custom_call.1
$region0: #{tpu_custom_call.1}
  #allocation0 [shape = 'u32[]', space=smem, size = 0x4, offset = 0x4, fixed_abs, tag = 'smem constant byte address 0x4 - core index']
  #allocation1 [shape = 'u32[144,128]{1,0:T(1,128)}', space=vmem, size = 0x12000, scoped, tag = 'internal scratch']
  %s0 = inlined_call_operand.vmem [shape: s32[8,1], index: 0, kind: input, shape index: {}]
  %s1 = inlined_call_operand.vmem [shape: f32[8,16], index: 1, kind: input, shape index: {}]
  %s2 = inlined_call_operand.hbm [shape: f32[8,16], index: 2, kind: input, shape index: {}]
  %s3 = inlined_call_operand.hbm [shape: f32[8,16], index: 3, kind: input, shape index: {}]
  %s4 = inlined_call_operand.vmem [shape: f32[8,16], index: 4, kind: input, shape index: {}]
  %s5 = inlined_call_operand.hbm [shape: f32[8,16], index: 5, kind: input, shape index: {}]
  %s6 = inlined_call_operand.hbm [shape: f32[8,16], index: 6, kind: input, shape index: {}]
  %s7 = inlined_call_operand.hbm [shape: f32[1,8,128], index: 7, kind: output, shape index: {0}]
  %s8 = inlined_call_operand.hbm [shape: f32[8,6], index: 8, kind: output, shape index: {1}]
  %9 = xla_tuple %s7, %s8
  %s10 = sld [smem:[#allocation0]]
  $region62: #{tpu_custom_call.1} parent=0
    _
  %s12 = ssub.s32 1, %s10
  %s13 = scalar_select 0, %s12, %s10
  $region1: #{tpu_custom_call.1} parent=0
    #allocation2 [shape = 'u8[4096]{0}', space=vmem, size = 0x1000, scoped, tag = 'input window, operand 2, single buffered']
    #allocation3 [shape = 's32[1]{0}', space=sflag, size = 0x4, scoped, tag = 'scoped memory for tpu_custom_call.1']
    #allocation4 [shape = 's32[1]{0}', space=sflag, size = 0x4, scoped, tag = 'scoped memory for tpu_custom_call.1']
    #allocation5 [shape = 'u8[4096]{0}', space=vmem, size = 0x1000, scoped, tag = 'input window, operand 3, single buffered']
    #allocation6 [shape = 's32[1]{0}', space=sflag, size = 0x4, scoped, tag = 'scoped memory for tpu_custom_call.1']
    #allocation7 [shape = 'u8[4096]{0}', space=vmem, size = 0x1000, scoped, tag = 'input window, operand 5, single buffered']
    #allocation8 [shape = 'u8[4096]{0}', space=vmem, size = 0x1000, scoped, tag = 'input window, operand 6, single buffered']
    #allocation9 [shape = 's32[1]{0}', space=sflag, size = 0x4, scoped, tag = 'scoped memory for tpu_custom_call.1']
    #allocation10 [shape = 'u8[4096]{0}', space=vmem, size = 0x1000, scoped, tag = 'output window, operand 0, single buffered']
    #allocation11 [shape = 'u8[4096]{0}', space=vmem, size = 0x1000, scoped, tag = 'output window, operand 1, single buffered']
    #allocation12 [shape = 's32[1]{0}', space=sflag, size = 0x4, scoped, tag = 'scoped memory for tpu_custom_call.1']
    %14 = vsyncpa [#allocation3], 0
    %15 = vsyncpa [#allocation6], 0
    %16 = vsyncpa [#allocation9], 0
    %17 = vsyncpa [#allocation4], 0
    %18 = vsyncpa [#allocation12], 0
    // Predicated region
    $region2: #{tpu_custom_call.1} parent=1 // pred_check
      _
    $region3: #{tpu_custom_call.1} parent=1 // pred_check_branch
      %20 = sbr.rel (0) target = $region5
    $region4: #{tpu_custom_call.1} parent=1 // pred_region
      _
    $region5: #{tpu_custom_call.1} parent=1 // pred_fallthru
      _
    // Predicated region
    $region6: #{tpu_custom_call.1} parent=1 // pred_check
      _
    $region7: #{tpu_custom_call.1} parent=1 // pred_check_branch
      %22 = sbr.rel (0) target = $region9
    $region8: #{tpu_custom_call.1} parent=1 // pred_region
      _
    $region9: #{tpu_custom_call.1} parent=1 // pred_fallthru
      _
    // Predicated region
    $region10: #{tpu_custom_call.1} parent=1 // pred_check
      _
    $region11: #{tpu_custom_call.1} parent=1 // pred_check_branch
      %24 = sbr.rel (0) target = $region13
    $region12: #{tpu_custom_call.1} parent=1 // pred_region
      %s26 = ssub.s32 128, 128
      %27 = vsyncadd [#allocation3], %s26
      %s29 = sshll.u32 [#allocation2], 4
      %s30 = int_to_ptr.vmem [resolvable:$true] %s29
      %32 = dma.hbm_to_vmem [thread:$0]  %s2, 128, %s30, [#allocation3]
    $region13: #{tpu_custom_call.1} parent=1 // pred_fallthru
      _
    // Predicated region
    $region14: #{tpu_custom_call.1} parent=1 // pred_check
      _
    $region15: #{tpu_custom_call.1} parent=1 // pred_check_branch
      %34 = sbr.rel (0) target = $region17
    $region16: #{tpu_custom_call.1} parent=1 // pred_region
      %s36 = ssub.s32 128, 128
      %37 = vsyncadd [#allocation6], %s36
      %s39 = sshll.u32 [#allocation5], 4
      %s40 = int_to_ptr.vmem [resolvable:$true] %s39
      %42 = dma.hbm_to_vmem [thread:$0]  %s3, 128, %s40, [#allocation6]
    $region17: #{tpu_custom_call.1} parent=1 // pred_fallthru
      _
    // Predicated region
    $region18: #{tpu_custom_call.1} parent=1 // pred_check
      _
    $region19: #{tpu_custom_call.1} parent=1 // pred_check_branch
      %44 = sbr.rel (0) target = $region21
    $region20: #{tpu_custom_call.1} parent=1 // pred_region
      _
    $region21: #{tpu_custom_call.1} parent=1 // pred_fallthru
      _
    // Predicated region
    $region22: #{tpu_custom_call.1} parent=1 // pred_check
      _
    $region23: #{tpu_custom_call.1} parent=1 // pred_check_branch
      %46 = sbr.rel (0) target = $region25
    $region24: #{tpu_custom_call.1} parent=1 // pred_region
      %s48 = ssub.s32 128, 128
      %49 = vsyncadd [#allocation6], %s48
      %s51 = sshll.u32 [#allocation7], 4
      %s52 = int_to_ptr.vmem [resolvable:$true] %s51
      %54 = dma.hbm_to_vmem [thread:$0]  %s5, 128, %s52, [#allocation6]
    $region25: #{tpu_custom_call.1} parent=1 // pred_fallthru
      _
    // Predicated region
    $region26: #{tpu_custom_call.1} parent=1 // pred_check
      _
    $region27: #{tpu_custom_call.1} parent=1 // pred_check_branch
      %56 = sbr.rel (0) target = $region29
    $region28: #{tpu_custom_call.1} parent=1 // pred_region
      %s58 = ssub.s32 128, 128
      %59 = vsyncadd [#allocation9], %s58
      %s61 = sshll.u32 [#allocation8], 4
      %s62 = int_to_ptr.vmem [resolvable:$true] %s61
      %64 = dma.hbm_to_vmem [thread:$0]  %s6, 128, %s62, [#allocation9]
    $region29: #{tpu_custom_call.1} parent=1 // pred_fallthru
      _
    // Predicated region
    $region30: #{tpu_custom_call.1} parent=1 // pred_check
      _
    $region31: #{tpu_custom_call.1} parent=1 // pred_check_branch
      %66 = sbr.rel (0) target = $region33
    $region32: #{tpu_custom_call.1} parent=1 // pred_region
      %67 = dma.done [#allocation3], 128
    $region33: #{tpu_custom_call.1} parent=1 // pred_fallthru
      _
    // Predicated region
    $region34: #{tpu_custom_call.1} parent=1 // pred_check
      _
    $region35: #{tpu_custom_call.1} parent=1 // pred_check_branch
      %69 = sbr.rel (0) target = $region37
    $region36: #{tpu_custom_call.1} parent=1 // pred_region
      %70 = dma.done [#allocation6], 128
    $region37: #{tpu_custom_call.1} parent=1 // pred_fallthru
      _
    // Predicated region
    $region38: #{tpu_custom_call.1} parent=1 // pred_check
      _
    $region39: #{tpu_custom_call.1} parent=1 // pred_check_branch
      %72 = sbr.rel (0) target = $region41
    $region40: #{tpu_custom_call.1} parent=1 // pred_region
      %73 = dma.done [#allocation6], 128
    $region41: #{tpu_custom_call.1} parent=1 // pred_fallthru
      _
    // Predicated region
    $region42: #{tpu_custom_call.1} parent=1 // pred_check
      _
    $region43: #{tpu_custom_call.1} parent=1 // pred_check_branch
      %75 = sbr.rel (0) target = $region45
    $region44: #{tpu_custom_call.1} parent=1 // pred_region
      %76 = dma.done [#allocation9], 128
    $region45: #{tpu_custom_call.1} parent=1 // pred_fallthru
      _
    %v77 = vld [vmem:[%s0] sm:$0xff]
    %v78 = vlaneseq
    %v79 = vand.u32 %v78, 127
    %80 = vset.pattern.permute.xlu0 0
    %81 = vperm.xlu0 %80, %v77
    %v82 = vpop.permute.xlu0 %81
    %vm83 = vcmp.eq.s32.totalorder %v79, %v82
    %v84 = vld [vmem:[%s1] sm:$0xff]
    %vm85 = vcmask 130048
    %v86 = vsel %vm85, %v84, -inf
    %87 = vmax.xlane.f32.xlu0 %v86
    %v88 = vpop.xlane.xlu0 %87
    %vm89 = vcmp.eq.f32.partialorder %v84, %v88
    %v90 = vsel %vm89, 1, 0
    %vm91 = vmand %vm89, %vm83
    %v92 = vsel %vm91, 1, 0
    %v93 = vshll.u32 %v92, 16
    %v94 = vadd.s32 %v90, %v93
    %v95 = vsel %vm85, %v94, 0
    %v96 = vand.u32 %v95, 65535
    %v97 = vshrl.u32 %v95, 16
    %v98 = vcvt.s32.f32 %v96
    %v99 = vcvt.s32.f32 %v97
    %100 = vadd.xlane.f32.xlu0 %v98
    %v101 = vpop.xlane.xlu0 %100
    %102 = vadd.xlane.f32.xlu0 %v99
    %v103 = vpop.xlane.xlu0 %102
    %v104 = vcvt.f32.s32 %v101
    %v105 = vcvt.f32.s32 %v103
    %v106 = vshll.u32 %v105, 16
    %v107 = vadd.s32 %v106, %v104
    %v108 = vand.u32 %v107, 65535
    %vm109 = vcmp.ge.s32.totalorder %v107, 65536
    %v110 = vsel %vm89, -3.4028235e+38, %v84
    %v111 = vsel %vm85, %v110, -inf
    %112 = vmax.xlane.f32.xlu0 %v111
    %v113 = vpop.xlane.xlu0 %112
    %vm114 = vcmp.gt.s32.totalorder %v108, 1
    %v115 = vsel %vm114, %v88, %v113
    %v116 = vsub.f32 %v88, %v115
    %v117 = vsel %vm109, %v116, 0.0
    %v118 = vld [vmem:[#allocation2] sm:$0xff]
    %v119 = vsel %vm85, %v118, -inf
    %120 = vmax.xlane.f32.xlu0 %v119
    %v121 = vpop.xlane.xlu0 %120
    %vm122 = vcmp.eq.f32.partialorder %v118, %v121
    %v123 = vsel %vm122, 1, 0
    %vm124 = vmand %vm122, %vm83
    %v125 = vsel %vm124, 1, 0
    %v126 = vshll.u32 %v125, 16
    %v127 = vadd.s32 %v123, %v126
    %v128 = vsel %vm85, %v127, 0
    %v129 = vand.u32 %v128, 65535
    %v130 = vshrl.u32 %v128, 16
    %v131 = vcvt.s32.f32 %v129
    %v132 = vcvt.s32.f32 %v130
    %133 = vadd.xlane.f32.xlu0 %v131
    %v134 = vpop.xlane.xlu0 %133
    %135 = vadd.xlane.f32.xlu0 %v132
    %v136 = vpop.xlane.xlu0 %135
    %v137 = vcvt.f32.s32 %v134
    %v138 = vcvt.f32.s32 %v136
    %v139 = vshll.u32 %v138, 16
    %v140 = vadd.s32 %v139, %v137
    %v141 = vand.u32 %v140, 65535
    %vm142 = vcmp.ge.s32.totalorder %v140, 65536
    %v143 = vsel %vm122, -3.4028235e+38, %v118
    %v144 = vsel %vm85, %v143, -inf
    %145 = vmax.xlane.f32.xlu0 %v144
    %v146 = vpop.xlane.xlu0 %145
    %vm147 = vcmp.gt.s32.totalorder %v141, 1
    %v148 = vsel %vm147, %v121, %v146
    %v149 = vsub.f32 %v121, %v148
    %v150 = vsel %vm142, %v149, 0.0
    %v151 = vmax.f32 %v88, %v121
    %v152 = vld [vmem:[#allocation5] sm:$0xff]
    %v153 = vsel %vm85, %v152, -inf
    %154 = vmax.xlane.f32.xlu0 %v153
    %v155 = vpop.xlane.xlu0 %154
    %vm156 = vcmp.eq.f32.partialorder %v152, %v155
    %v157 = vsel %vm156, 1, 0
    %vm158 = vmand %vm156, %vm83
    %v159 = vsel %vm158, 1, 0
    %v160 = vshll.u32 %v159, 16
    %v161 = vadd.s32 %v157, %v160
    %v162 = vsel %vm85, %v161, 0
    %v163 = vand.u32 %v162, 65535
    %v164 = vshrl.u32 %v162, 16
    %v165 = vcvt.s32.f32 %v163
    %v166 = vcvt.s32.f32 %v164
    %167 = vadd.xlane.f32.xlu0 %v165
    %v168 = vpop.xlane.xlu0 %167
    %169 = vadd.xlane.f32.xlu0 %v166
    %v170 = vpop.xlane.xlu0 %169
    %v171 = vcvt.f32.s32 %v168
    %v172 = vcvt.f32.s32 %v170
    %v173 = vshll.u32 %v172, 16
    %v174 = vadd.s32 %v173, %v171
    %v175 = vand.u32 %v174, 65535
    %vm176 = vcmp.ge.s32.totalorder %v174, 65536
    %v177 = vsel %vm156, -3.4028235e+38, %v152
    %v178 = vsel %vm85, %v177, -inf
    %179 = vmax.xlane.f32.xlu0 %v178
    %v180 = vpop.xlane.xlu0 %179
    %vm181 = vcmp.gt.s32.totalorder %v175, 1
    %v182 = vsel %vm181, %v155, %v180
    %v183 = vsub.f32 %v155, %v182
    %v184 = vsel %vm176, %v183, 0.0
    %v185 = vmax.f32 %v151, %v155
    %v186 = vld [vmem:[%s4] sm:$0xff]
    %v187 = vsel %vm85, %v186, -inf
    %188 = vmax.xlane.f32.xlu0 %v187
    %v189 = vpop.xlane.xlu0 %188
    %vm190 = vcmp.eq.f32.partialorder %v186, %v189
    %v191 = vsel %vm190, 1, 0
    %vm192 = vmand %vm190, %vm83
    %v193 = vsel %vm192, 1, 0
    %v194 = vshll.u32 %v193, 16
    %v195 = vadd.s32 %v191, %v194
    %v196 = vsel %vm85, %v195, 0
    %v197 = vand.u32 %v196, 65535
    %v198 = vshrl.u32 %v196, 16
    %v199 = vcvt.s32.f32 %v197
    %v200 = vcvt.s32.f32 %v198
    %201 = vadd.xlane.f32.xlu0 %v199
    %v202 = vpop.xlane.xlu0 %201
    %203 = vadd.xlane.f32.xlu0 %v200
    %v204 = vpop.xlane.xlu0 %203
    %v205 = vcvt.f32.s32 %v202
    %v206 = vcvt.f32.s32 %v204
    %v207 = vshll.u32 %v206, 16
    %v208 = vadd.s32 %v207, %v205
    %v209 = vand.u32 %v208, 65535
    %vm210 = vcmp.ge.s32.totalorder %v208, 65536
    %v211 = vsel %vm190, -3.4028235e+38, %v186
    %v212 = vsel %vm85, %v211, -inf
    %213 = vmax.xlane.f32.xlu0 %v212
    %v214 = vpop.xlane.xlu0 %213
    %vm215 = vcmp.gt.s32.totalorder %v209, 1
    %v216 = vsel %vm215, %v189, %v214
    %v217 = vsub.f32 %v189, %v216
    %v218 = vsel %vm210, %v217, 0.0
    %v219 = vmax.f32 %v185, %v189
    %v220 = vld [vmem:[#allocation7] sm:$0xff]
    %v221 = vsel %vm85, %v220, -inf
    %222 = vmax.xlane.f32.xlu0 %v221
    %v223 = vpop.xlane.xlu0 %222
    %vm224 = vcmp.eq.f32.partialorder %v220, %v223
    %v225 = vsel %vm224, 1, 0
    %vm226 = vmand %vm224, %vm83
    %v227 = vsel %vm226, 1, 0
    %v228 = vshll.u32 %v227, 16
    %v229 = vadd.s32 %v225, %v228
    %v230 = vsel %vm85, %v229, 0
    %v231 = vand.u32 %v230, 65535
    %v232 = vshrl.u32 %v230, 16
    %v233 = vcvt.s32.f32 %v231
    %v234 = vcvt.s32.f32 %v232
    %235 = vadd.xlane.f32.xlu0 %v233
    %v236 = vpop.xlane.xlu0 %235
    %237 = vadd.xlane.f32.xlu0 %v234
    %v238 = vpop.xlane.xlu0 %237
    %v239 = vcvt.f32.s32 %v236
    %v240 = vcvt.f32.s32 %v238
    %v241 = vshll.u32 %v240, 16
    %v242 = vadd.s32 %v241, %v239
    %v243 = vand.u32 %v242, 65535
    %vm244 = vcmp.ge.s32.totalorder %v242, 65536
    %v245 = vsel %vm224, -3.4028235e+38, %v220
    %v246 = vsel %vm85, %v245, -inf
    %247 = vmax.xlane.f32.xlu0 %v246
    %v248 = vpop.xlane.xlu0 %247
    %vm249 = vcmp.gt.s32.totalorder %v243, 1
    %v250 = vsel %vm249, %v223, %v248
    %v251 = vsub.f32 %v223, %v250
    %v252 = vsel %vm244, %v251, 0.0
    %v253 = vmax.f32 %v219, %v223
    %v254 = vld [vmem:[#allocation8] sm:$0xff]
    %v255 = vsel %vm85, %v254, -inf
    %256 = vmax.xlane.f32.xlu0 %v255
    %v257 = vpop.xlane.xlu0 %256
    %vm258 = vcmp.eq.f32.partialorder %v254, %v257
    %v259 = vsel %vm258, 1, 0
    %vm260 = vmand %vm258, %vm83
    %v261 = vsel %vm260, 1, 0
    %v262 = vshll.u32 %v261, 16
    %v263 = vadd.s32 %v259, %v262
    %v264 = vsel %vm85, %v263, 0
    %v265 = vand.u32 %v264, 65535
    %v266 = vshrl.u32 %v264, 16
    %v267 = vcvt.s32.f32 %v265
    %v268 = vcvt.s32.f32 %v266
    %269 = vadd.xlane.f32.xlu0 %v267
    %v270 = vpop.xlane.xlu0 %269
    %271 = vadd.xlane.f32.xlu0 %v268
    %v272 = vpop.xlane.xlu0 %271
    %v273 = vcvt.f32.s32 %v270
    %v274 = vcvt.f32.s32 %v272
    %v275 = vshll.u32 %v274, 16
    %v276 = vadd.s32 %v275, %v273
    %v277 = vand.u32 %v276, 65535
    %vm278 = vcmp.ge.s32.totalorder %v276, 65536
    %v279 = vsel %vm258, -3.4028235e+38, %v254
    %v280 = vsel %vm85, %v279, -inf
    %281 = vmax.xlane.f32.xlu0 %v280
    %v282 = vpop.xlane.xlu0 %281
    %vm283 = vcmp.gt.s32.totalorder %v277, 1
    %v284 = vsel %vm283, %v257, %v282
    %v285 = vsub.f32 %v257, %v284
    %v286 = vsel %vm278, %v285, 0.0
    %vm287 = vcmp.eq.s32.totalorder %v79, 0
    %v288 = vsel %vm287, 1, 0
    %vm289 = vcmp.eq.s32.totalorder %v288, 1
    %v290 = vsel %vm289, %v117, 0.0
    %v291 = vadd.f32 %v290, 0.0
    %vm292 = vcmp.eq.s32.totalorder %v79, 1
    %v293 = vsel %vm292, 1, 0
    %vm294 = vcmp.eq.s32.totalorder %v293, 1
    %v295 = vsel %vm294, %v150, 0.0
    %v296 = vadd.f32 %v291, %v295
    %vm297 = vcmp.eq.s32.totalorder %v79, 2
    %v298 = vsel %vm297, 1, 0
    %vm299 = vcmp.eq.s32.totalorder %v298, 1
    %v300 = vsel %vm299, %v184, 0.0
    %v301 = vadd.f32 %v296, %v300
    %vm302 = vcmp.eq.s32.totalorder %v79, 3
    %v303 = vsel %vm302, 1, 0
    %vm304 = vcmp.eq.s32.totalorder %v303, 1
    %v305 = vsel %vm304, %v218, 0.0
    %v306 = vadd.f32 %v301, %v305
    %vm307 = vcmp.eq.s32.totalorder %v79, 4
    %v308 = vsel %vm307, 1, 0
    %vm309 = vcmp.eq.s32.totalorder %v308, 1
    %v310 = vsel %vm309, %v252, 0.0
    %v311 = vadd.f32 %v306, %v310
    %vm312 = vcmp.eq.s32.totalorder %v79, 5
    %v313 = vsel %vm312, 1, 0
    %vm314 = vcmp.eq.s32.totalorder %v313, 1
    %v315 = vsel %vm314, %v286, 0.0
    %v316 = vadd.f32 %v311, %v315
    %v317 = vmul.f32 %v316, 0.5
    %vm318 = vcmask 48128
    %v319 = vsel %vm318, %v317, -inf
    %320 = vmax.xlane.f32.xlu0 %v319
    %v321 = vpop.xlane.xlu0 %320
    %v322 = vsub.f32 %v317, %v321
    %v323 = vmul.f32 %v322, 1.442695
    %v324 = vpow.pop %v323
    %v325 = vsel %vm318, %v324, 0.0
    %326 = vadd.xlane.f32.xlu0 %v325
    %v327 = vpop.xlane.xlu0 %326
    %v328 = vrcp.pop %v327
    %v329 = vmul.f32 %v324, %v328
    %330 = vst.msk [vmem:[#allocation11] sm:$0xff] %vm318, %v329
    %s331 = smul.u32 0, 8
    %v332 = vlaneseq
    %v333 = vshrl.u32 %v332, 7
    %v334 = vstv %s331
    %v335 = vadd.s32 %v334, %v333
    %vm336 = vcmp.lt.s32.totalorder %v335, 8
    %v337 = vsel %vm336, %v253, -3.4028235e+38
    %v338 = vrot.slane %v337, 4
    %v339 = vmax.f32 %v337, %v338
    %v340 = vrot.slane %v339, 2
    %v341 = vmax.f32 %v339, %v340
    %v342 = vrot.slane %v341, 1
    %v343 = vmax.f32 %v341, %v342
    %344 = vst [vmem:[#allocation10] sm:$0xff] %v343
    // Predicated region
    $region46: #{tpu_custom_call.1} parent=1 // pred_check
      _
    $region47: #{tpu_custom_call.1} parent=1 // pred_check_branch
      %346 = sbr.rel (0) target = $region49
    $region48: #{tpu_custom_call.1} parent=1 // pred_region
      %s348 = ssub.s32 128, 128
      %349 = vsyncadd [#allocation4], %s348
      %s351 = sshll.u32 [#allocation10], 4
      %s352 = int_to_ptr.vmem [resolvable:$true] %s351
      %354 = dma.vmem_to_hbm [thread:$0]  %s352, 128, %s7, [#allocation4]
    $region49: #{tpu_custom_call.1} parent=1 // pred_fallthru
      _
    // Predicated region
    $region50: #{tpu_custom_call.1} parent=1 // pred_check
      _
    $region51: #{tpu_custom_call.1} parent=1 // pred_check_branch
      %356 = sbr.rel (0) target = $region53
    $region52: #{tpu_custom_call.1} parent=1 // pred_region
      %s358 = ssub.s32 128, 128
      %359 = vsyncadd [#allocation12], %s358
      %s361 = sshll.u32 [#allocation11], 4
      %s362 = int_to_ptr.vmem [resolvable:$true] %s361
      %364 = dma.vmem_to_hbm [thread:$0]  %s362, 128, %s8, [#allocation12]
    $region53: #{tpu_custom_call.1} parent=1 // pred_fallthru
      _
    // Predicated region
    $region54: #{tpu_custom_call.1} parent=1 // pred_check
      _
    $region55: #{tpu_custom_call.1} parent=1 // pred_check_branch
      %366 = sbr.rel (0) target = $region57
    $region56: #{tpu_custom_call.1} parent=1 // pred_region
      %367 = dma.done [#allocation4], 128
    $region57: #{tpu_custom_call.1} parent=1 // pred_fallthru
      _
    // Predicated region
    $region58: #{tpu_custom_call.1} parent=1 // pred_check
      _
    $region59: #{tpu_custom_call.1} parent=1 // pred_check_branch
      %369 = sbr.rel (0) target = $region61
    $region60: #{tpu_custom_call.1} parent=1 // pred_region
      %370 = dma.done [#allocation12], 128
    $region61: #{tpu_custom_call.1} parent=1 // pred_fallthru
      _
    %371 = vsyncpa [#allocation3], 1
    %372 = vsyncpa [#allocation6], 1
    %373 = vsyncpa [#allocation9], 1
    %374 = vsyncpa [#allocation4], 1
    %375 = vsyncpa [#allocation12], 1

</llo_original>
